<compile_context>
chip_gen: v7x
topology: tpu7x:2x2x1
jax: 0.10.0
libtpu: 0.0.40
codegen_flags: <defaults>
</compile_context>

<pallas_src>
import functools

import jax
import jax.numpy as jnp
from jax import lax
from jax.experimental import pallas as pl
from jax.experimental.pallas import tpu as pltpu


def _round_up(x, m):
    return ((x + m - 1) // m) * m


def _sublane_align(dtype):
    # sublane packing quantum: 8 for 32-bit, 16 for 16-bit, 32 for 8-bit dtypes
    return max(8, 32 // jnp.dtype(dtype).itemsize)


def _multi_loss_kernel(x1_ref, t1_ref, x2_ref, t2_ref, w_ref,
                       out_ref, acc_mse_ref, acc_sl1_ref,
                       *, mse_scale, sl1_scale):
    """Weighted MSE + weighted SmoothL1 (beta=1) partial sums over row tiles."""
    i = pl.program_id(1)                      # reduction axis (row blocks)
    n_inner = pl.num_programs(1)

    @pl.when(i == 0)
    def _init():
        acc_mse_ref[...] = jnp.zeros_like(acc_mse_ref)
        acc_sl1_ref[...] = jnp.zeros_like(acc_sl1_ref)

    tr, cols = x1_ref.shape                   # static
    w = w_ref[...].astype(jnp.float32)        # (tr, 1) -> broadcast over lanes

    # ---- loss 0: KeypointMSELoss(use_target_weight=True) ------------------
    # F.mse_loss(x*w, t*w) = mean(((x - t) * w)^2)
    d1 = (x1_ref[...].astype(jnp.float32) - t1_ref[...].astype(jnp.float32)) * w
    sq1 = d1 * d1

    # ---- loss 1: SmoothL1Loss(use_target_weight=True), beta = 1.0 ---------
    d2 = (x2_ref[...].astype(jnp.float32) - t2_ref[...].astype(jnp.float32)) * w
    a2 = jnp.abs(d2)
    sq2 = jnp.where(a2 < 1.0, 0.5 * d2 * d2, a2 - 0.5)

    # Lane-dense accumulation: fold sublane groups with VPU adds only;
    # no per-step cross-lane reduction, no per-step scalar store.
    if tr > 8:
        sq1 = jnp.sum(sq1.reshape(tr // 8, 8, cols), axis=0)
        sq2 = jnp.sum(sq2.reshape(tr // 8, 8, cols), axis=0)
    acc_mse_ref[...] += sq1
    acc_sl1_ref[...] += sq2

    # Epilogue: one full reduce + scale, single unmasked (1,8,128) store.
    @pl.when(i == n_inner - 1)
    def _finalize():
        mse = jnp.sum(acc_mse_ref[...]) * mse_scale
        sl1 = jnp.sum(acc_sl1_ref[...]) * sl1_scale
        sub = lax.broadcasted_iota(jnp.int32, (8, 128), 0)
        lane = lax.broadcasted_iota(jnp.int32, (8, 128), 1)
        vals = jnp.where((sub == 0) & (lane == 0), mse,
                         jnp.where((sub == 0) & (lane == 1), sl1, 0.0))
        out_ref[...] = vals[None].astype(out_ref.dtype)


class MultipleLossWrapper:
    """JAX/Pallas port of mmpose MultipleLossWrapper with 2 heatmap losses."""

    def __init__(self, loss_weights=(1.0, 0.5), max_tile_rows=1024,
                 stream_vmem_budget_bytes=20 * 1024 * 1024):
        self.loss_weights = tuple(float(w) for w in loss_weights)
        self.num_losses = len(self.loss_weights)
        self.max_tile_rows = int(max_tile_rows)
        self.stream_vmem_budget_bytes = int(stream_vmem_budget_bytes)

    # ---- tile sizing ------------------------------------------------------
    def _choose_tile_rows(self, rows, cols, dtypes):
        row_align = max(_sublane_align(d) for d in dtypes)
        itemsizes = [jnp.dtype(d).itemsize for d in dtypes]
        # double-buffered per-row bytes for 4 heatmap streams + (rows,1) weights
        per_row_bytes = 2 * (cols * sum(itemsizes) + 4)
        tr_cap = min(self.max_tile_rows,
                     self.stream_vmem_budget_bytes // per_row_bytes)
        tr_cap = max(row_align, (tr_cap // row_align) * row_align)

        if rows <= tr_cap:
            return _round_up(rows, row_align)
        # prefer a tile that divides rows exactly (no padding pass needed)
        for cand in range(tr_cap, row_align - 1, -row_align):
            if rows % cand == 0:
                return cand
        return tr_cap

    # ---- forward ----------------------------------------------------------
    def __call__(self, input_list, target_list, keypoint_weights=None):
        assert len(input_list) == len(target_list) == self.num_losses

        x1, x2 = input_list
        t1, t2 = target_list
        B, K, H, W = x1.shape
        rows, cols = B * K, H * W

        dtypes = [x1.dtype, t1.dtype, x2.dtype, t2.dtype]
        itemsizes = [jnp.dtype(d).itemsize for d in dtypes]

        tr = self._choose_tile_rows(rows, cols, dtypes)
        padded_rows = _round_up(rows, tr)
        total_blocks = padded_rows // tr
        num_splits = 2 if (total_blocks >= 2 and total_blocks % 2 == 0) else 1
        nblk = total_blocks // num_splits

        # --- wrapper-side layout glue (reshape only; no dtype copies) ------
        def _prep(a):
            a2 = a.reshape(rows, cols)
            if padded_rows != rows:
                a2 = jnp.pad(a2, ((0, padded_rows - rows), (0, 0)))
            return a2

        x1f, t1f, x2f, t2f = _prep(x1), _prep(t1), _prep(x2), _prep(t2)

        if keypoint_weights is None:
            wf = jnp.ones((rows, 1), jnp.float32)
        else:
            wf = keypoint_weights.reshape(rows, 1).astype(jnp.float32)
        if padded_rows != rows:
            wf = jnp.pad(wf, ((0, padded_rows - rows), (0, 0)))  # zero weights

        # mean denominator uses the ORIGINAL element count (padding has w=0)
        n_elems = float(rows * cols)
        kernel = functools.partial(
            _multi_loss_kernel,
            mse_scale=self.loss_weights[0] / n_elems,
            sl1_scale=self.loss_weights[1] / n_elems,
        )

        row_block_idx = lambda p, i: (p * nblk + i, 0)
        hm_spec = pl.BlockSpec((tr, cols), row_block_idx)
        w_spec = pl.BlockSpec((tr, 1), row_block_idx)
        out_spec = pl.BlockSpec((1, 8, 128), lambda p, i: (p, 0, 0))

        cost = pl.CostEstimate(
            flops=14 * padded_rows * cols,
            transcendentals=0,
            bytes_accessed=(padded_rows * cols * sum(itemsizes)
                            + padded_rows * 4 + num_splits * 8 * 128 * 4),
        )

        out = pl.pallas_call(
            kernel,
            out_shape=jax.ShapeDtypeStruct((num_splits, 8, 128), jnp.float32),
            grid_spec=pltpu.PrefetchScalarGridSpec(
                num_scalar_prefetch=0,
                grid=(num_splits, nblk),
                in_specs=[hm_spec, hm_spec, hm_spec, hm_spec, w_spec],
                out_specs=out_spec,
                scratch_shapes=[pltpu.VMEM((8, cols), jnp.float32),
                                pltpu.VMEM((8, cols), jnp.float32)],
            ),
            compiler_params=pltpu.CompilerParams(
                dimension_semantics=("parallel", "arbitrary"),
                vmem_limit_bytes=32 * 1024 * 1024,
            ),
            cost_estimate=cost,
        )(x1f, t1f, x2f, t2f, wf)

        # combine per-core partial (already scaled) sums; return list of scalars
        mse = jnp.sum(out[:, 0, 0])
        sl1 = jnp.sum(out[:, 0, 1])
        return [mse, sl1]


def _reference(input_list, target_list, kw, loss_weights=(1.0, 0.5)):
    """Pure-JAX reference matching mmpose semantics (for self-check)."""
    x1, x2 = input_list
    t1, t2 = target_list
    w = kw[:, :, None, None].astype(jnp.float32)
    mse = jnp.mean(((x1 - t1) * w) ** 2) * loss_weights[0]
    d = (x2 - t2) * w
    a = jnp.abs(d)
    sl1 = jnp.mean(jnp.where(a < 1.0, 0.5 * d * d, a - 0.5)) * loss_weights[1]
    return [mse, sl1]


if __name__ == "__main__":
    B, K, H, W = 2, 4, 16, 16
    key = jax.random.PRNGKey(0)
    k1, k2, k3, k4, k5 = jax.random.split(key, 5)

    input_list = [
        jax.random.normal(k1, (B, K, H, W), jnp.float32),
        jax.random.normal(k2, (B, K, H, W), jnp.float32) * 2.0,
    ]
    target_list = [
        jax.random.normal(k3, (B, K, H, W), jnp.float32),
        jax.random.normal(k4, (B, K, H, W), jnp.float32) * 2.0,
    ]
    keypoint_weights = jax.random.uniform(k5, (B, K), jnp.float32)

    wrapper = MultipleLossWrapper(loss_weights=(1.0, 0.5))
    losses = wrapper(input_list, target_list, keypoint_weights)
    losses = [jax.block_until_ready(l) for l in losses]

    ref = _reference(input_list, target_list, keypoint_weights)
    for got, want in zip(losses, ref):
        assert jnp.allclose(got, want, rtol=1e-5, atol=1e-5), (got, want)

    print("KERNEL_OK")
</pallas_src>

<mosaic_0001>
module attributes {stable_mosaic.version = 11 : i64} {
  func.func @_multi_loss_kernel(%arg0: i32, %arg1: i32, %arg2: memref<8x256xf32, #tpu.memory_space<vmem>>, %arg3: memref<8x256xf32, #tpu.memory_space<vmem>>, %arg4: memref<8x256xf32, #tpu.memory_space<vmem>>, %arg5: memref<8x256xf32, #tpu.memory_space<vmem>>, %arg6: memref<8x1xf32, #tpu.memory_space<vmem>>, %arg7: memref<1x8x128xf32, #tpu.memory_space<vmem>>, %arg8: memref<8x256xf32, #tpu.memory_space<vmem>>, %arg9: memref<8x256xf32, #tpu.memory_space<vmem>>) attributes {dimension_semantics = [#tpu.dimension_semantics<parallel>, #tpu.dimension_semantics<arbitrary>], iteration_bounds = array<i64: 1, 1>, scalar_prefetch = 0 : i64, scratch_operands = 2 : i64, tpu.core_type = #tpu.core_type<tc>, window_params = [{transform_indices = @transform_0, window_bounds = array<i64: 8, 256>}, {transform_indices = @transform_1, window_bounds = array<i64: 8, 256>}, {transform_indices = @transform_2, window_bounds = array<i64: 8, 256>}, {transform_indices = @transform_3, window_bounds = array<i64: 8, 256>}, {transform_indices = @transform_4, window_bounds = array<i64: 8, 1>}, {transform_indices = @transform_5, window_bounds = array<i64: 1, 8, 128>}]} {
    %c0_i32 = arith.constant 0 : i32
    %0 = arith.cmpi eq, %arg1, %c0_i32 : i32
    %1 = arith.extui %0 : i1 to i32
    %c0_i32_0 = arith.constant 0 : i32
    %2 = arith.cmpi ne, %1, %c0_i32_0 : i32
    scf.if %2 {
      %cst_22 = arith.constant 0.000000e+00 : f32
      %33 = vector.broadcast %cst_22 : f32 to vector<8x256xf32>
      %c0_23 = arith.constant 0 : index
      %c0_24 = arith.constant 0 : index
      %34 = vector.load %arg8[%c0_23, %c0_24] : memref<8x256xf32, #tpu.memory_space<vmem>>, vector<8x256xf32>
      tpu.vector_store %arg8[%c0_23, %c0_24], %33 {strides = array<i32>} : memref<8x256xf32, #tpu.memory_space<vmem>>, vector<8x256xf32>,
      %cst_25 = arith.constant 0.000000e+00 : f32
      %35 = vector.broadcast %cst_25 : f32 to vector<8x256xf32>
      %c0_26 = arith.constant 0 : index
      %c0_27 = arith.constant 0 : index
      %36 = vector.load %arg9[%c0_26, %c0_27] : memref<8x256xf32, #tpu.memory_space<vmem>>, vector<8x256xf32>
      tpu.vector_store %arg9[%c0_26, %c0_27], %35 {strides = array<i32>} : memref<8x256xf32, #tpu.memory_space<vmem>>, vector<8x256xf32>,
    } else {
    }
    %c0 = arith.constant 0 : index
    %c0_1 = arith.constant 0 : index
    %3 = vector.load %arg6[%c0, %c0_1] : memref<8x1xf32, #tpu.memory_space<vmem>>, vector<8x1xf32>
    %c0_2 = arith.constant 0 : index
    %c0_3 = arith.constant 0 : index
    %4 = vector.load %arg2[%c0_2, %c0_3] : memref<8x256xf32, #tpu.memory_space<vmem>>, vector<8x256xf32>
    %c0_4 = arith.constant 0 : index
    %c0_5 = arith.constant 0 : index
    %5 = vector.load %arg3[%c0_4, %c0_5] : memref<8x256xf32, #tpu.memory_space<vmem>>, vector<8x256xf32>
    %6 = arith.subf %4, %5 : vector<8x256xf32>
    %7 = vector.broadcast %3 : vector<8x1xf32> to vector<8x256xf32>
    %8 = arith.mulf %6, %7 : vector<8x256xf32>
    %9 = arith.mulf %8, %8 : vector<8x256xf32>
    %c0_6 = arith.constant 0 : index
    %c0_7 = arith.constant 0 : index
    %10 = vector.load %arg4[%c0_6, %c0_7] : memref<8x256xf32, #tpu.memory_space<vmem>>, vector<8x256xf32>
    %c0_8 = arith.constant 0 : index
    %c0_9 = arith.constant 0 : index
    %11 = vector.load %arg5[%c0_8, %c0_9] : memref<8x256xf32, #tpu.memory_space<vmem>>, vector<8x256xf32>
    %12 = arith.subf %10, %11 : vector<8x256xf32>
    %13 = vector.broadcast %3 : vector<8x1xf32> to vector<8x256xf32>
    %14 = arith.mulf %12, %13 : vector<8x256xf32>
    %15 = math.absf %14 : vector<8x256xf32>
    %cst = arith.constant 1.000000e+00 : f32
    %16 = vector.broadcast %cst : f32 to vector<8x256xf32>
    %17 = arith.cmpf olt, %15, %16 : vector<8x256xf32>
    %cst_10 = arith.constant 5.000000e-01 : f32
    %18 = vector.broadcast %cst_10 : f32 to vector<8x256xf32>
    %19 = arith.mulf %18, %14 : vector<8x256xf32>
    %20 = arith.mulf %19, %14 : vector<8x256xf32>
    %cst_11 = arith.constant 5.000000e-01 : f32
    %21 = vector.broadcast %cst_11 : f32 to vector<8x256xf32>
    %22 = arith.subf %15, %21 : vector<8x256xf32>
    %23 = arith.select %17, %20, %22 : vector<8x256xi1>, vector<8x256xf32>
    %c0_12 = arith.constant 0 : index
    %c0_13 = arith.constant 0 : index
    %24 = vector.load %arg8[%c0_12, %c0_13] : memref<8x256xf32, #tpu.memory_space<vmem>>, vector<8x256xf32>
    %25 = arith.addf %24, %9 : vector<8x256xf32>
    %c0_14 = arith.constant 0 : index
    %c0_15 = arith.constant 0 : index
    %26 = vector.load %arg8[%c0_14, %c0_15] : memref<8x256xf32, #tpu.memory_space<vmem>>, vector<8x256xf32>
    tpu.vector_store %arg8[%c0_14, %c0_15], %25 {strides = array<i32>} : memref<8x256xf32, #tpu.memory_space<vmem>>, vector<8x256xf32>,
    %c0_16 = arith.constant 0 : index
    %c0_17 = arith.constant 0 : index
    %27 = vector.load %arg9[%c0_16, %c0_17] : memref<8x256xf32, #tpu.memory_space<vmem>>, vector<8x256xf32>
    %28 = arith.addf %27, %23 : vector<8x256xf32>
    %c0_18 = arith.constant 0 : index
    %c0_19 = arith.constant 0 : index
    %29 = vector.load %arg9[%c0_18, %c0_19] : memref<8x256xf32, #tpu.memory_space<vmem>>, vector<8x256xf32>
    tpu.vector_store %arg9[%c0_18, %c0_19], %28 {strides = array<i32>} : memref<8x256xf32, #tpu.memory_space<vmem>>, vector<8x256xf32>,
    %c0_i32_20 = arith.constant 0 : i32
    %30 = arith.cmpi eq, %arg1, %c0_i32_20 : i32
    %31 = arith.extui %30 : i1 to i32
    %c0_i32_21 = arith.constant 0 : i32
    %32 = arith.cmpi ne, %31, %c0_i32_21 : i32
    scf.if %32 {
      %c0_22 = arith.constant 0 : index
      %c0_23 = arith.constant 0 : index
      %33 = vector.load %arg8[%c0_22, %c0_23] : memref<8x256xf32, #tpu.memory_space<vmem>>, vector<8x256xf32>
      %34 = vector.shape_cast %33 : vector<8x256xf32> to vector<1x8x256xf32>
      %cst_24 = arith.constant dense<0.000000e+00> : vector<1xf32>
      %35 = vector.multi_reduction <add>, %34, %cst_24 [1, 2] : vector<1x8x256xf32> to vector<1xf32>
      %36 = vector.shape_cast %35 : vector<1xf32> to vector<1x1x1xf32>
      %37 = vector.extract %36[0, 0, 0] : f32 from vector<1x1x1xf32>
      %cst_25 = arith.constant 4.8828125E-4 : f32
      %38 = arith.mulf %37, %cst_25 : f32
      %c0_26 = arith.constant 0 : index
      %c0_27 = arith.constant 0 : index
      %39 = vector.load %arg9[%c0_26, %c0_27] : memref<8x256xf32, #tpu.memory_space<vmem>>, vector<8x256xf32>
      %40 = vector.shape_cast %39 : vector<8x256xf32> to vector<1x8x256xf32>
      %cst_28 = arith.constant dense<0.000000e+00> : vector<1xf32>
      %41 = vector.multi_reduction <add>, %40, %cst_28 [1, 2] : vector<1x8x256xf32> to vector<1xf32>
      %42 = vector.shape_cast %41 : vector<1xf32> to vector<1x1x1xf32>
      %43 = vector.extract %42[0, 0, 0] : f32 from vector<1x1x1xf32>
      %cst_29 = arith.constant 2.44140625E-4 : f32
      %44 = arith.mulf %43, %cst_29 : f32
      %45 = tpu.iota {dimensions = array<i32: 0>} : vector<8x128xi32>
      %46 = tpu.iota {dimensions = array<i32: 1>} : vector<8x128xi32>
      %c0_i32_30 = arith.constant 0 : i32
      %47 = vector.broadcast %c0_i32_30 : i32 to vector<8x128xi32>
      %48 = arith.cmpi eq, %45, %47 : vector<8x128xi32>
      %c0_i32_31 = arith.constant 0 : i32
      %49 = vector.broadcast %c0_i32_31 : i32 to vector<8x128xi32>
      %50 = arith.cmpi eq, %46, %49 : vector<8x128xi32>
      %51 = arith.andi %48, %50 : vector<8x128xi1>
      %c0_i32_32 = arith.constant 0 : i32
      %52 = vector.broadcast %c0_i32_32 : i32 to vector<8x128xi32>
      %53 = arith.cmpi eq, %45, %52 : vector<8x128xi32>
      %c1_i32 = arith.constant 1 : i32
      %54 = vector.broadcast %c1_i32 : i32 to vector<8x128xi32>
      %55 = arith.cmpi eq, %46, %54 : vector<8x128xi32>
      %56 = arith.andi %53, %55 : vector<8x128xi1>
      %cst_33 = arith.constant 0.000000e+00 : f32
      %57 = vector.broadcast %44 : f32 to vector<8x128xf32>
      %58 = vector.broadcast %cst_33 : f32 to vector<8x128xf32>
      %59 = arith.select %56, %57, %58 : vector<8x128xi1>, vector<8x128xf32>
      %60 = vector.broadcast %38 : f32 to vector<8x128xf32>
      %61 = arith.select %51, %60, %59 : vector<8x128xi1>, vector<8x128xf32>
      %62 = vector.shape_cast %61 : vector<8x128xf32> to vector<1x8x128xf32>
      %c0_34 = arith.constant 0 : index
      %c0_35 = arith.constant 0 : index
      %c0_36 = arith.constant 0 : index
      %63 = vector.load %arg7[%c0_34, %c0_35, %c0_36] : memref<1x8x128xf32, #tpu.memory_space<vmem>>, vector<1x8x128xf32>
      tpu.vector_store %arg7[%c0_34, %c0_35, %c0_36], %62 {strides = array<i32>} : memref<1x8x128xf32, #tpu.memory_space<vmem>>, vector<1x8x128xf32>,
    } else {
    }
    return
  }
  func.func @transform_0(%arg0: i32, %arg1: i32) -> (i32, i32) {
    %c1_i32 = arith.constant 1 : i32
    %0 = arith.muli %arg0, %c1_i32 : i32
    %1 = arith.addi %0, %arg1 : i32
    %c0_i32 = arith.constant 0 : i32
    %c0_i32_0 = arith.constant 0 : i32
    return %1, %c0_i32 : i32, i32
  }
  func.func @transform_1(%arg0: i32, %arg1: i32) -> (i32, i32) {
    %c1_i32 = arith.constant 1 : i32
    %0 = arith.muli %arg0, %c1_i32 : i32
    %1 = arith.addi %0, %arg1 : i32
    %c0_i32 = arith.constant 0 : i32
    %c0_i32_0 = arith.constant 0 : i32
    return %1, %c0_i32 : i32, i32
  }
  func.func @transform_2(%arg0: i32, %arg1: i32) -> (i32, i32) {
    %c1_i32 = arith.constant 1 : i32
    %0 = arith.muli %arg0, %c1_i32 : i32
    %1 = arith.addi %0, %arg1 : i32
    %c0_i32 = arith.constant 0 : i32
    %c0_i32_0 = arith.constant 0 : i32
    return %1, %c0_i32 : i32, i32
  }
  func.func @transform_3(%arg0: i32, %arg1: i32) -> (i32, i32) {
    %c1_i32 = arith.constant 1 : i32
    %0 = arith.muli %arg0, %c1_i32 : i32
    %1 = arith.addi %0, %arg1 : i32
    %c0_i32 = arith.constant 0 : i32
    %c0_i32_0 = arith.constant 0 : i32
    return %1, %c0_i32 : i32, i32
  }
  func.func @transform_4(%arg0: i32, %arg1: i32) -> (i32, i32) {
    %c1_i32 = arith.constant 1 : i32
    %0 = arith.muli %arg0, %c1_i32 : i32
    %1 = arith.addi %0, %arg1 : i32
    %c0_i32 = arith.constant 0 : i32
    %c0_i32_0 = arith.constant 0 : i32
    return %1, %c0_i32 : i32, i32
  }
  func.func @transform_5(%arg0: i32, %arg1: i32) -> (i32, i32, i32) {
    %c0_i32 = arith.constant 0 : i32
    %c0_i32_0 = arith.constant 0 : i32
    %c0_i32_1 = arith.constant 0 : i32
    return %arg0, %c0_i32, %c0_i32_0 : i32, i32, i32
  }
}

</mosaic_0001>

<llo_original>
// kernel: tpu_custom_call.1
$region0: #{tpu_custom_call.1}
  #allocation0 [shape = 'u32[]', space=smem, size = 0x4, offset = 0x4, fixed_abs, tag = 'smem constant byte address 0x4 - core index']
  #allocation1 [shape = 'u32[144,128]{1,0:T(1,128)}', space=vmem, size = 0x12000, scoped, tag = 'internal scratch']
  #allocation2 [shape = 'f32[8,256]{1,0:T(8,128)}', space=vmem, size = 0x2000, scoped, tag = 'scratch operand']
  #allocation3 [shape = 'f32[8,256]{1,0:T(8,128)}', space=vmem, size = 0x2000, scoped, tag = 'scratch operand']
  %s0 = inlined_call_operand.hbm [shape: f32[8,256], index: 0, kind: input, shape index: {}]
  %s1 = inlined_call_operand.hbm [shape: f32[8,256], index: 1, kind: input, shape index: {}]
  %s2 = inlined_call_operand.vmem [shape: f32[8,256], index: 2, kind: input, shape index: {}]
  %s3 = inlined_call_operand.hbm [shape: f32[8,256], index: 3, kind: input, shape index: {}]
  %s4 = inlined_call_operand.vmem [shape: f32[8,1], index: 4, kind: input, shape index: {}]
  %s5 = inlined_call_operand.hbm [shape: f32[1,8,128], index: 5, kind: output, shape index: {}]
  %s6 = sld [smem:[#allocation0]]
  $region50: #{tpu_custom_call.1} parent=0
    _
  %s8 = ssub.s32 1, %s6
  %s9 = scalar_select 0, %s8, %s6
  $region1: #{tpu_custom_call.1} parent=0
    #allocation4 [shape = 'u8[8192]{0}', space=vmem, size = 0x2000, scoped, tag = 'input window, operand 0, single buffered']
    #allocation5 [shape = 's32[1]{0}', space=sflag, size = 0x4, scoped, tag = 'scoped memory for tpu_custom_call.1']
    #allocation6 [shape = 's32[1]{0}', space=sflag, size = 0x4, scoped, tag = 'scoped memory for tpu_custom_call.1']
    #allocation7 [shape = 'u8[8192]{0}', space=vmem, size = 0x2000, scoped, tag = 'input window, operand 1, single buffered']
    #allocation8 [shape = 's32[1]{0}', space=sflag, size = 0x4, scoped, tag = 'scoped memory for tpu_custom_call.1']
    #allocation9 [shape = 'u8[8192]{0}', space=vmem, size = 0x2000, scoped, tag = 'input window, operand 3, single buffered']
    #allocation10 [shape = 'u8[4096]{0}', space=vmem, size = 0x1000, scoped, tag = 'output window, operand 0, single buffered']
    %10 = vsyncpa [#allocation5], 0
    %11 = vsyncpa [#allocation8], 0
    %12 = vsyncpa [#allocation6], 0
    // Predicated region
    $region2: #{tpu_custom_call.1} parent=1 // pred_check
      _
    $region3: #{tpu_custom_call.1} parent=1 // pred_check_branch
      %14 = sbr.rel (0) target = $region5
    $region4: #{tpu_custom_call.1} parent=1 // pred_region
      %s15 = sadd.s32 0, 0
      %s17 = ssub.s32 256, 256
      %18 = vsyncadd [#allocation5], %s17
      %s19 = smul.addr %s15, 2
      %s20 = smul.addr %s19, 128
      %s21 = scalar_lea.hbm %s0, %s20
      %s23 = sshll.u32 [#allocation4], 4
      %s24 = int_to_ptr.vmem [resolvable:$true] %s23
      %26 = dma.hbm_to_vmem [thread:$0]  %s21, 256, %s24, [#allocation5]
    $region5: #{tpu_custom_call.1} parent=1 // pred_fallthru
      _
    // Predicated region
    $region6: #{tpu_custom_call.1} parent=1 // pred_check
      _
    $region7: #{tpu_custom_call.1} parent=1 // pred_check_branch
      %28 = sbr.rel (0) target = $region9
    $region8: #{tpu_custom_call.1} parent=1 // pred_region
      %s29 = sadd.s32 0, 0
      %s31 = ssub.s32 256, 256
      %32 = vsyncadd [#allocation8], %s31
      %s33 = smul.addr %s29, 2
      %s34 = smul.addr %s33, 128
      %s35 = scalar_lea.hbm %s1, %s34
      %s37 = sshll.u32 [#allocation7], 4
      %s38 = int_to_ptr.vmem [resolvable:$true] %s37
      %40 = dma.hbm_to_vmem [thread:$0]  %s35, 256, %s38, [#allocation8]
    $region9: #{tpu_custom_call.1} parent=1 // pred_fallthru
      _
    // Predicated region
    $region10: #{tpu_custom_call.1} parent=1 // pred_check
      _
    $region11: #{tpu_custom_call.1} parent=1 // pred_check_branch
      %42 = sbr.rel (0) target = $region13
    $region12: #{tpu_custom_call.1} parent=1 // pred_region
      %s43 = sadd.s32 0, 0
      %p44 = scmp.lt.s32.totalorder %s43, 0
      %s45 = scalar_select %p44, %s43, 0
      %s46 = smul.addr %s45, 2
      %s47 = smul.addr %s46, 8
      %s48 = scalar_lea.vmem %s2, %s47
      %s49 = sadd.s32 0, 0
    $region13: #{tpu_custom_call.1} parent=1 // pred_fallthru
      _
    // Predicated region
    $region14: #{tpu_custom_call.1} parent=1 // pred_check
      _
    $region15: #{tpu_custom_call.1} parent=1 // pred_check_branch
      %51 = sbr.rel (0) target = $region17
    $region16: #{tpu_custom_call.1} parent=1 // pred_region
      %s52 = sadd.s32 0, 0
      %s54 = ssub.s32 256, 256
      %55 = vsyncadd [#allocation8], %s54
      %s56 = smul.addr %s52, 2
      %s57 = smul.addr %s56, 128
      %s58 = scalar_lea.hbm %s3, %s57
      %s60 = sshll.u32 [#allocation9], 4
      %s61 = int_to_ptr.vmem [resolvable:$true] %s60
      %63 = dma.hbm_to_vmem [thread:$0]  %s58, 256, %s61, [#allocation8]
    $region17: #{tpu_custom_call.1} parent=1 // pred_fallthru
      _
    // Predicated region
    $region18: #{tpu_custom_call.1} parent=1 // pred_check
      _
    $region19: #{tpu_custom_call.1} parent=1 // pred_check_branch
      %65 = sbr.rel (0) target = $region21
    $region20: #{tpu_custom_call.1} parent=1 // pred_region
      %s66 = sadd.s32 0, 0
      %p67 = scmp.lt.s32.totalorder %s66, 0
      %s68 = scalar_select %p67, %s66, 0
      %s69 = smul.addr %s68, 8
      %s70 = scalar_lea.vmem %s4, %s69
      %s71 = sadd.s32 0, 0
    $region21: #{tpu_custom_call.1} parent=1 // pred_fallthru
      _
    // Predicated region
    $region22: #{tpu_custom_call.1} parent=1 // pred_check
      _
    $region23: #{tpu_custom_call.1} parent=1 // pred_check_branch
      %73 = sbr.rel (0) target = $region25
    $region24: #{tpu_custom_call.1} parent=1 // pred_region
      %74 = dma.done [#allocation5], 256
    $region25: #{tpu_custom_call.1} parent=1 // pred_fallthru
      _
    // Predicated region
    $region26: #{tpu_custom_call.1} parent=1 // pred_check
      _
    $region27: #{tpu_custom_call.1} parent=1 // pred_check_branch
      %76 = sbr.rel (0) target = $region29
    $region28: #{tpu_custom_call.1} parent=1 // pred_region
      %77 = dma.done [#allocation8], 256
    $region29: #{tpu_custom_call.1} parent=1 // pred_fallthru
      _
    // Predicated region
    $region30: #{tpu_custom_call.1} parent=1 // pred_check
      _
    $region31: #{tpu_custom_call.1} parent=1 // pred_check_branch
      %79 = sbr.rel (0) target = $region33
    $region32: #{tpu_custom_call.1} parent=1 // pred_region
      %80 = dma.done [#allocation8], 256
    $region33: #{tpu_custom_call.1} parent=1 // pred_fallthru
      _
    %s81 = sadd.s32 0, 0
    %p82 = scmp.lt.s32.totalorder %s81, 0
    %s83 = scalar_select %p82, %s81, 0
    %s84 = smul.addr %s83, 2
    %s85 = smul.addr %s84, 8
    %s86 = scalar_lea.vmem %s2, %s85
    %s87 = sadd.s32 0, 0
    %p88 = scmp.lt.s32.totalorder %s87, 0
    %s89 = scalar_select %p88, %s87, 0
    %s90 = smul.addr %s89, 8
    %s91 = scalar_lea.vmem %s4, %s90
    %s92 = sadd.s32 0, 0
    %s93 = sadd.s32 0, 0
    %s94 = sadd.s32 0, 0
    %p95 = scmp.lt.s32.totalorder %s94, 0
    %s96 = scalar_select %p95, %s94, 0
    %s97 = smul.addr %s96, 2
    %s98 = smul.addr %s97, 8
    %s99 = scalar_lea.vmem %s2, %s98
    %s100 = sadd.s32 0, 0
    %s101 = sadd.s32 0, 0
    %s102 = sadd.s32 0, 0
    %p103 = scmp.lt.s32.totalorder %s102, 0
    %s104 = scalar_select %p103, %s102, 0
    %s105 = smul.addr %s104, 8
    %s106 = scalar_lea.vmem %s4, %s105
    %s107 = sadd.s32 0, 0
    %p108 = scmp.eq.s32.totalorder 0, 0
    // Predicated region
    $region34: #{tpu_custom_call.1} parent=1 // pred_check
      %p109 = pneg %p108
    $region35: #{tpu_custom_call.1} parent=1 // pred_check_branch
      %111 = sbr.rel (%p109) target = $region37
    $region36: #{tpu_custom_call.1} parent=1 // pred_region
      %112 = vst [vmem:[#allocation2] sm:$0xff] 0.0
      %113 = vst [vmem:[#allocation2 + $0x8] sm:$0xff] 0.0
      %114 = vst [vmem:[#allocation3] sm:$0xff] 0.0
      %115 = vst [vmem:[#allocation3 + $0x8] sm:$0xff] 0.0
    $region37: #{tpu_custom_call.1} parent=1 // pred_fallthru
      _
    %v116 = vld [vmem:[%s106] sm:$0xff]
    %v117 = vld [vmem:[#allocation4] sm:$0xff]
    %v118 = vld [vmem:[#allocation4 + $0x8] sm:$0xff]
    %v119 = vld [vmem:[#allocation7] sm:$0xff]
    %v120 = vld [vmem:[#allocation7 + $0x8] sm:$0xff]
    %v121 = vsub.f32 %v117, %v119
    %v122 = vsub.f32 %v118, %v120
    %124 = vset.pattern.permute.xlu0 0
    %125 = vperm.xlu0 %124, %v116
    %v126 = vpop.permute.xlu0 %125
    %v128 = vmul.f32 %v121, %v126
    %v129 = vmul.f32 %v122, %v126
    %v130 = vmul.f32 %v128, %v128
    %v131 = vmul.f32 %v129, %v129
    %v132 = vld [vmem:[%s99] sm:$0xff]
    %v133 = vld [vmem:[%s99 + $0x8] sm:$0xff]
    %v134 = vld [vmem:[#allocation9] sm:$0xff]
    %v135 = vld [vmem:[#allocation9 + $0x8] sm:$0xff]
    %v136 = vsub.f32 %v132, %v134
    %v137 = vsub.f32 %v133, %v135
    %v138 = vmul.f32 %v136, %v126
    %v139 = vmul.f32 %v137, %v126
    %v140 = vand.u32 2147483647, %v138
    %v141 = vand.u32 2147483647, %v139
    %vm142 = vcmp.lt.f32.partialorder %v140, 1.0
    %vm143 = vcmp.lt.f32.partialorder %v141, 1.0
    %v144 = vmul.f32 %v138, 0.5
    %v145 = vmul.f32 %v139, 0.5
    %v146 = vmul.f32 %v144, %v138
    %v147 = vmul.f32 %v145, %v139
    %v148 = vsub.f32 %v140, 0.5
    %v149 = vsub.f32 %v141, 0.5
    %v150 = vsel %vm142, %v146, %v148
    %v151 = vsel %vm143, %v147, %v149
    %v152 = vld [vmem:[#allocation2] sm:$0xff]
    %v153 = vld [vmem:[#allocation2 + $0x8] sm:$0xff]
    %v154 = vadd.f32 %v152, %v130
    %v155 = vadd.f32 %v153, %v131
    %156 = vst [vmem:[#allocation2] sm:$0xff] %v154
    %157 = vst [vmem:[#allocation2 + $0x8] sm:$0xff] %v155
    %v158 = vld [vmem:[#allocation3] sm:$0xff]
    %v159 = vld [vmem:[#allocation3 + $0x8] sm:$0xff]
    %v160 = vadd.f32 %v158, %v150
    %v161 = vadd.f32 %v159, %v151
    %162 = vst [vmem:[#allocation3] sm:$0xff] %v160
    %163 = vst [vmem:[#allocation3 + $0x8] sm:$0xff] %v161
    // Predicated region
    $region38: #{tpu_custom_call.1} parent=1 // pred_check
      %p164 = pneg %p108
    $region39: #{tpu_custom_call.1} parent=1 // pred_check_branch
      %166 = sbr.rel (%p164) target = $region41
    $region40: #{tpu_custom_call.1} parent=1 // pred_region
      %v167 = vld [vmem:[#allocation2] sm:$0xff]
      %v168 = vld [vmem:[#allocation2 + $0x8] sm:$0xff]
      %v169 = vadd.f32 %v167, %v168
      %170 = vadd.xlane.f32.xlu0 %v169
      %v171 = vpop.xlane.xlu0 %170
      %v172 = vrot.slane %v171, 4
      %v173 = vadd.f32 %v171, %v172
      %v174 = vrot.slane %v173, 2
      %v175 = vadd.f32 %v173, %v174
      %v176 = vrot.slane %v175, 1
      %v177 = vadd.f32 %v175, %v176
      %s178 = vtos %v177
      %s179 = smul.f32 %s178, 0.00048828125
      %v180 = vld [vmem:[#allocation3] sm:$0xff]
      %v181 = vld [vmem:[#allocation3 + $0x8] sm:$0xff]
      %v182 = vadd.f32 %v180, %v181
      %183 = vadd.xlane.f32.xlu0 %v182
      %v184 = vpop.xlane.xlu0 %183
      %v185 = vrot.slane %v184, 4
      %v186 = vadd.f32 %v184, %v185
      %v187 = vrot.slane %v186, 2
      %v188 = vadd.f32 %v186, %v187
      %v189 = vrot.slane %v188, 1
      %v190 = vadd.f32 %v188, %v189
      %s191 = vtos %v190
      %s192 = smul.f32 %s191, 0.00024414063
      %v193 = vlaneseq
      %v194 = vshrl.u32 %v193, 7
      %v195 = vlaneseq
      %v196 = vand.u32 %v195, 127
      %vm197 = vcmp.eq.s32.totalorder %v194, 0
      %vm198 = vcmp.eq.s32.totalorder %v196, 0
      %vm199 = vmand %vm197, %vm198
      %vm200 = vcmp.eq.s32.totalorder %v196, 1
      %vm201 = vmand %vm197, %vm200
      %v202 = vstv %s192
      %v203 = vsel %vm201, %v202, 0.0
      %v204 = vstv %s179
      %v205 = vsel %vm199, %v204, %v203
      %206 = vst [vmem:[#allocation10] sm:$0xff] %v205
    $region41: #{tpu_custom_call.1} parent=1 // pred_fallthru
      _
    // Predicated region
    $region42: #{tpu_custom_call.1} parent=1 // pred_check
      _
    $region43: #{tpu_custom_call.1} parent=1 // pred_check_branch
      %208 = sbr.rel (0) target = $region45
    $region44: #{tpu_custom_call.1} parent=1 // pred_region
      %s210 = ssub.s32 128, 128
      %211 = vsyncadd [#allocation6], %s210
      %s213 = sshll.u32 [#allocation10], 4
      %s214 = int_to_ptr.vmem [resolvable:$true] %s213
      %216 = dma.vmem_to_hbm [thread:$0]  %s214, 128, %s5, [#allocation6]
    $region45: #{tpu_custom_call.1} parent=1 // pred_fallthru
      _
    // Predicated region
    $region46: #{tpu_custom_call.1} parent=1 // pred_check
      _
    $region47: #{tpu_custom_call.1} parent=1 // pred_check_branch
      %218 = sbr.rel (0) target = $region49
    $region48: #{tpu_custom_call.1} parent=1 // pred_region
      %219 = dma.done [#allocation6], 128
    $region49: #{tpu_custom_call.1} parent=1 // pred_fallthru
      _
    %220 = vsyncpa [#allocation5], 1
    %221 = vsyncpa [#allocation8], 1
    %222 = vsyncpa [#allocation6], 1

</llo_original>
